<compile_context>
chip_gen: v7x
topology: tpu7x:2x2x1
jax: 0.10.0
libtpu: 0.0.40
codegen_flags: <defaults>
</compile_context>

<pallas_src>
import functools

import jax
import jax.numpy as jnp
from jax import lax
from jax.experimental import pallas as pl
from jax.experimental.pallas import tpu as pltpu

_EPS = 1e-8            # nn.CosineSimilarity eps — positive path only; the PyTorch
_EPS_SQ = _EPS * _EPS  # negative path uses the module's raw cosinesim (no clamp).


def _ccl_ce_kernel(ax_ref, ay_ref, ay_inv_ref, pos_ref, out_ref,
                   ax_f32_ref, inv_ax_pos_ref, neg_max_ref, s_ref, acc_ref,
                   *, inv_temp, row_tile, pos_block, n_pos, gram_dtype):
    i = pl.program_id(0)          # anchor row tile
    j = pl.program_id(1)          # positive block
    n_steps = pl.num_programs(1)

    # ---- per-row-tile work: done once (j == 0), cached in VMEM scratch ---------
    @pl.when(j == 0)
    def _init():
        ax = ax_ref[...].astype(jnp.float32)                       # (TB, D)
        ax_f32_ref[...] = ax                                       # reused by every positive

        # Contract last dims directly on the MXU (no materialized transpose).
        # bf16 inputs / f32 accumulation when the inputs are f32 (3x fewer MXU passes
        # on the 256x256 bf16 MXUs of v6e/v7x); well within tolerance for cosine scores.
        gram = lax.dot_general(
            ax_ref[...].astype(gram_dtype), ay_ref[...].astype(gram_dtype),
            dimension_numbers=(((1,), (1,)), ((), ())),
            preferred_element_type=jnp.float32)                    # (TB, B)

        ax_nsq = jnp.sum(ax * ax, axis=-1, keepdims=True)          # (TB, 1)
        inv_ax = lax.rsqrt(ax_nsq)                                 # unclamped: matches torch cosinesim
        # ay_inv_ref already holds rsqrt(||ay||^2) * (1/T)  ->  two (TB,B) multiplies, not three.
        neg = gram * inv_ax * ay_inv_ref[...]                      # (TB, B)

        row0 = i * row_tile
        rows = lax.broadcasted_iota(jnp.int32, neg.shape, 0) + row0
        cols = lax.broadcasted_iota(jnp.int32, neg.shape, 1)
        off_diag = rows != cols                                    # torch: diag -> -inf

        neg_max = jnp.max(jnp.where(off_diag, neg, -jnp.inf),
                          axis=-1, keepdims=True)                  # (TB, 1)
        # Single B x B transcendental pass, reused by every positive.
        s = jnp.sum(jnp.where(off_diag, jnp.exp(neg - neg_max), 0.0),
                    axis=-1, keepdims=True)                        # (TB, 1)
        # Degenerate TB == B == 1 tile: neg_max = -inf, s = 0; the lse formula below
        # still resolves to pos_score via IEEE exp(-inf) == 0 semantics.

        # Positive-path denominator factor (nn.CosineSimilarity eps clamp), with the
        # temperature folded in so the per-positive path saves one (TB,1) multiply.
        inv_ax_pos_ref[...] = lax.rsqrt(jnp.maximum(ax_nsq, _EPS_SQ)) * inv_temp
        neg_max_ref[...] = neg_max
        s_ref[...] = s
        acc_ref[...] = jnp.zeros_like(acc_ref)

    # ---- per-positive work: O(TB*D) reductions + O(TB) exp/log, Pc per grid step ---
    ax = ax_f32_ref[...]                                           # cached f32 tile
    inv_ax_pos = inv_ax_pos_ref[...]
    neg_max = neg_max_ref[...]
    s = s_ref[...]

    partial = jnp.zeros_like(acc_ref)
    for q in range(pos_block):                                     # unrolled, Pc small
        pos = pos_ref[q].astype(jnp.float32)                       # (TB, D)
        p_nsq = jnp.sum(pos * pos, axis=-1, keepdims=True)         # (TB, 1)
        dotv = jnp.sum(ax * pos, axis=-1, keepdims=True)           # (TB, 1)
        pos_score = dotv * inv_ax_pos * lax.rsqrt(jnp.maximum(p_nsq, _EPS_SQ))

        m = jnp.maximum(pos_score, neg_max)
        lse = m + jnp.log(jnp.exp(pos_score - m) + s * jnp.exp(neg_max - m))

        # Mask out zero-padded positives on the (possibly partial) last block.
        valid = (j * pos_block + q) < n_pos
        partial = partial + jnp.where(valid, lse - pos_score, 0.0)

    acc_ref[...] += partial

    # Single store per row tile (no per-step masked RMW on a 1-lane output block).
    @pl.when(j == n_steps - 1)
    def _store():
        out_ref[...] = acc_ref[...]


def _pick_row_tile(b):
    cands = (256, 128, 64, 32, 16, 8)
    # Prefer >= 2 row tiles so the "parallel" axis can occupy both v7x TensorCores.
    for t in cands:
        if b % t == 0 and b // t >= 2:
            return t
    for t in cands:
        if b % t == 0:
            return t
    return b   # block == full array dim is always legal


def _vmem_limit_bytes():
    # Per-generation VMEM budget with headroom for double-buffering
    # (v5e/v6e: 128 MiB physical, v7x: 64 MiB).
    try:
        cap = pltpu.get_tpu_info().vmem_capacity_bytes
    except Exception:
        cap = 64 * 1024 * 1024
    return max(32 * 1024 * 1024, min(int(cap * 3 // 4), 96 * 1024 * 1024))


def ccl_crossentropy(anchorx, anchory, positives, temperature=1.0,
                     pos_block=4, gram_in_bf16=True):
    """anchorx/anchory: (B, ...); positives: (P, B, ...). Returns scalar f32 loss."""
    b = anchorx.shape[0]
    ax = anchorx.reshape(b, -1)
    ay = anchory.reshape(b, -1)
    d = ax.shape[1]
    n_pos = positives.shape[0]
    pos = positives.reshape(n_pos, b, -1)

    inv_temp = float(1.0 / temperature)

    # Precompute anchory inverse norms (scaled by 1/T) once on the XLA side: removes
    # a (B, D) f32 materialization + row reduce that was recomputed for every row tile.
    ay_f32 = ay.astype(jnp.float32)
    ay_inv = (lax.rsqrt(jnp.sum(ay_f32 * ay_f32, axis=-1, keepdims=True))
              * jnp.float32(inv_temp)).T                            # (1, B)

    tb = _pick_row_tile(b)
    n_tiles = b // tb

    # Block the positives axis (amortize per-grid-step overhead), pad + mask remainder.
    pc = max(1, min(int(pos_block), n_pos))
    n_steps = (n_pos + pc - 1) // pc
    n_pos_pad = n_steps * pc
    if n_pos_pad != n_pos:
        pos = jnp.pad(pos, ((0, n_pos_pad - n_pos), (0, 0), (0, 0)))

    gram_dtype = ax.dtype
    if gram_in_bf16 and ax.dtype == jnp.float32:
        gram_dtype = jnp.bfloat16

    kernel = functools.partial(
        _ccl_ce_kernel,
        inv_temp=inv_temp, row_tile=tb, pos_block=pc, n_pos=n_pos,
        gram_dtype=gram_dtype)

    row_losses = pl.pallas_call(
        kernel,
        out_shape=jax.ShapeDtypeStruct((b, 1), jnp.float32),
        grid_spec=pltpu.PrefetchScalarGridSpec(
            num_scalar_prefetch=0,
            grid=(n_tiles, n_steps),
            in_specs=[
                pl.BlockSpec((tb, d), lambda i, j: (i, 0)),          # anchorx row tile
                pl.BlockSpec((b, d), lambda i, j: (0, 0)),           # anchory (resident)
                pl.BlockSpec((1, b), lambda i, j: (0, 0)),           # 1/||ay|| * 1/T (resident)
                pl.BlockSpec((pc, tb, d), lambda i, j: (j, i, 0)),   # Pc positive slabs
            ],
            out_specs=pl.BlockSpec((tb, 1), lambda i, j: (i, 0)),    # per-row loss sum
            scratch_shapes=[
                pltpu.VMEM((tb, d), jnp.float32),   # cached f32 anchorx tile
                pltpu.VMEM((tb, 1), jnp.float32),   # clamped 1/||ax|| * 1/T
                pltpu.VMEM((tb, 1), jnp.float32),   # neg row max
                pltpu.VMEM((tb, 1), jnp.float32),   # S = sum exp(neg - max)
                pltpu.VMEM((tb, 1), jnp.float32),   # loss accumulator
            ],
        ),
        compiler_params=pltpu.CompilerParams(
            dimension_semantics=("parallel", "arbitrary"),
            vmem_limit_bytes=_vmem_limit_bytes(),
        ),
    )(ax, ay, ay_inv, pos)

    return jnp.sum(row_losses) / jnp.float32(n_pos * b)


def _reference_loss(anchorx, anchory, positives, temperature=1.0):
    """Pure-JAX replica of the PyTorch forward (for verification)."""
    b = anchorx.shape[0]
    ax = anchorx.reshape(b, -1).astype(jnp.float32)
    ay = anchory.reshape(b, -1).astype(jnp.float32)
    nx = jnp.sqrt(jnp.sum(ax * ax, axis=-1))
    ny = jnp.sqrt(jnp.sum(ay * ay, axis=-1))
    neg = (ax @ ay.T) / (nx[:, None] * ny[None, :]) / temperature
    neg = neg.at[jnp.arange(b), jnp.arange(b)].set(-jnp.inf)
    rows = []
    for i in range(positives.shape[0]):
        pp = positives[i].reshape(b, -1).astype(jnp.float32)
        pn = jnp.sqrt(jnp.sum(pp * pp, axis=-1))
        denom = jnp.maximum(nx, _EPS) * jnp.maximum(pn, _EPS)       # nn.CosineSimilarity
        ps = jnp.sum(ax * pp, axis=-1) / denom / temperature
        rows.append(jnp.concatenate([ps[:, None], neg], axis=1))
    logits = jnp.concatenate(rows, axis=0)
    lse = jax.scipy.special.logsumexp(logits, axis=-1)
    return jnp.mean(lse - logits[:, 0])


if __name__ == "__main__":
    def _run_case(B, D, P, temperature, pos_block):
        key = jax.random.PRNGKey(0)
        kx, ky, kp = jax.random.split(key, 3)
        anchorx = jax.random.normal(kx, (B, D), dtype=jnp.float32)
        anchory = jax.random.normal(ky, (B, D), dtype=jnp.float32)
        positives = jax.random.normal(kp, (P, B, D), dtype=jnp.float32)

        loss = jax.block_until_ready(
            ccl_crossentropy(anchorx, anchory, positives, temperature,
                             pos_block=pos_block))
        ref = jax.block_until_ready(
            _reference_loss(anchorx, anchory, positives, temperature))

        assert jnp.isfinite(loss), f"non-finite loss: {loss}"
        # bf16 Gram + EUP rsqrt/exp inside the kernel -> slightly loose tolerance.
        assert jnp.allclose(loss, ref, rtol=3e-3, atol=3e-3), f"mismatch: {loss} vs {ref}"

    # batch=8, hidden (bert_hidden_units)=32, 2 positive views (module-consistent shapes).
    _run_case(B=8, D=32, P=2, temperature=0.5, pos_block=4)
    # Exercises 2 row tiles plus positive-block padding + masking (P=3, Pc=2).
    _run_case(B=16, D=32, P=3, temperature=1.0, pos_block=2)

    print("KERNEL_OK")
</pallas_src>

<mosaic_0001>
module attributes {stable_mosaic.version = 11 : i64} {
  func.func @_ccl_ce_kernel(%arg0: i32, %arg1: i32, %arg2: memref<8x32xf32, #tpu.memory_space<vmem>>, %arg3: memref<8x32xf32, #tpu.memory_space<vmem>>, %arg4: memref<1x8xf32, #tpu.memory_space<vmem>>, %arg5: memref<2x8x32xf32, #tpu.memory_space<vmem>>, %arg6: memref<8x1xf32, #tpu.memory_space<vmem>>, %arg7: memref<8x32xf32, #tpu.memory_space<vmem>>, %arg8: memref<8x1xf32, #tpu.memory_space<vmem>>, %arg9: memref<8x1xf32, #tpu.memory_space<vmem>>, %arg10: memref<8x1xf32, #tpu.memory_space<vmem>>, %arg11: memref<8x1xf32, #tpu.memory_space<vmem>>) attributes {dimension_semantics = [#tpu.dimension_semantics<parallel>, #tpu.dimension_semantics<arbitrary>], iteration_bounds = array<i64: 1, 1>, scalar_prefetch = 0 : i64, scratch_operands = 5 : i64, tpu.core_type = #tpu.core_type<tc>, window_params = [{transform_indices = @transform_0, window_bounds = array<i64: 8, 32>}, {pipeline_mode = #tpu.pipeline_mode<synchronous>, transform_indices = @transform_1, window_bounds = array<i64: 8, 32>}, {pipeline_mode = #tpu.pipeline_mode<synchronous>, transform_indices = @transform_2, window_bounds = array<i64: 1, 8>}, {transform_indices = @transform_3, window_bounds = array<i64: 2, 8, 32>}, {transform_indices = @transform_4, window_bounds = array<i64: 8, 1>}]} {
    %c0_i32 = arith.constant 0 : i32
    %0 = arith.cmpi eq, %arg1, %c0_i32 : i32
    %1 = arith.extui %0 : i1 to i32
    %c0_i32_0 = arith.constant 0 : i32
    %2 = arith.cmpi ne, %1, %c0_i32_0 : i32
    scf.if %2 {
      %c0_31 = arith.constant 0 : index
      %c0_32 = arith.constant 0 : index
      %72 = vector.load %arg2[%c0_31, %c0_32] : memref<8x32xf32, #tpu.memory_space<vmem>>, vector<8x32xf32>
      %c0_33 = arith.constant 0 : index
      %c0_34 = arith.constant 0 : index
      %73 = vector.load %arg7[%c0_33, %c0_34] : memref<8x32xf32, #tpu.memory_space<vmem>>, vector<8x32xf32>
      tpu.vector_store %arg7[%c0_33, %c0_34], %72 {strides = array<i32>} : memref<8x32xf32, #tpu.memory_space<vmem>>, vector<8x32xf32>,
      %c0_35 = arith.constant 0 : index
      %c0_36 = arith.constant 0 : index
      %74 = vector.load %arg2[%c0_35, %c0_36] : memref<8x32xf32, #tpu.memory_space<vmem>>, vector<8x32xf32>
      %75 = arith.truncf %74 : vector<8x32xf32> to vector<8x32xbf16>
      %c0_37 = arith.constant 0 : index
      %c0_38 = arith.constant 0 : index
      %76 = vector.load %arg3[%c0_37, %c0_38] : memref<8x32xf32, #tpu.memory_space<vmem>>, vector<8x32xf32>
      %77 = arith.truncf %76 : vector<8x32xf32> to vector<8x32xbf16>
      %cst_39 = arith.constant dense<0.000000e+00> : vector<8x8xf32>
      %78 = tpu.matmul %75, %77, %cst_39 {dimension_numbers = #tpu.dot_dimension_numbers<[1], [1], [0], [0], [0, 0, 1, 0], [], []>} : vector<8x32xbf16>, vector<8x32xbf16>, vector<8x8xf32> -> vector<8x8xf32>
      %79 = arith.mulf %72, %72 : vector<8x32xf32>
      %cst_40 = arith.constant dense<0.000000e+00> : vector<8xf32>
      %80 = vector.multi_reduction <add>, %79, %cst_40 [1] : vector<8x32xf32> to vector<8xf32>
      %81 = vector.shape_cast %80 : vector<8xf32> to vector<8x1xf32>
      %82 = math.rsqrt %81 : vector<8x1xf32>
      %83 = vector.broadcast %82 : vector<8x1xf32> to vector<8x8xf32>
      %84 = arith.mulf %78, %83 : vector<8x8xf32>
      %c0_41 = arith.constant 0 : index
      %c0_42 = arith.constant 0 : index
      %85 = vector.load %arg4[%c0_41, %c0_42] : memref<1x8xf32, #tpu.memory_space<vmem>>, vector<1x8xf32>
      %86 = vector.broadcast %85 : vector<1x8xf32> to vector<8x8xf32>
      %87 = arith.mulf %84, %86 : vector<8x8xf32>
      %c8_i32 = arith.constant 8 : i32
      %88 = arith.muli %arg0, %c8_i32 : i32
      %89 = tpu.iota {dimensions = array<i32: 0>} : vector<8x8xi32>
      %90 = vector.broadcast %88 : i32 to vector<8x8xi32>
      %91 = arith.addi %89, %90 : vector<8x8xi32>
      %92 = tpu.iota {dimensions = array<i32: 1>} : vector<8x8xi32>
      %93 = arith.cmpi ne, %91, %92 : vector<8x8xi32>
      %cst_43 = arith.constant 0xFF800000 : f32
      %94 = vector.broadcast %cst_43 : f32 to vector<8x8xf32>
      %95 = arith.select %93, %87, %94 : vector<8x8xi1>, vector<8x8xf32>
      %cst_44 = arith.constant dense<0xFF800000> : vector<8xf32>
      %96 = vector.multi_reduction <maximumf>, %95, %cst_44 [1] : vector<8x8xf32> to vector<8xf32>
      %97 = vector.shape_cast %96 : vector<8xf32> to vector<8x1xf32>
      %98 = vector.broadcast %97 : vector<8x1xf32> to vector<8x8xf32>
      %99 = arith.subf %87, %98 : vector<8x8xf32>
      %100 = math.exp %99 : vector<8x8xf32>
      %cst_45 = arith.constant 0.000000e+00 : f32
      %101 = vector.broadcast %cst_45 : f32 to vector<8x8xf32>
      %102 = arith.select %93, %100, %101 : vector<8x8xi1>, vector<8x8xf32>
      %cst_46 = arith.constant dense<0.000000e+00> : vector<8xf32>
      %103 = vector.multi_reduction <add>, %102, %cst_46 [1] : vector<8x8xf32> to vector<8xf32>
      %104 = vector.shape_cast %103 : vector<8xf32> to vector<8x1xf32>
      %cst_47 = arith.constant 1.000000e-16 : f32
      %105 = vector.broadcast %cst_47 : f32 to vector<8x1xf32>
      %106 = arith.maximumf %81, %105 : vector<8x1xf32>
      %107 = math.rsqrt %106 : vector<8x1xf32>
      %cst_48 = arith.constant 2.000000e+00 : f32
      %108 = vector.broadcast %cst_48 : f32 to vector<8x1xf32>
      %109 = arith.mulf %107, %108 : vector<8x1xf32>
      %c0_49 = arith.constant 0 : index
      %c0_50 = arith.constant 0 : index
      %110 = vector.load %arg8[%c0_49, %c0_50] : memref<8x1xf32, #tpu.memory_space<vmem>>, vector<8x1xf32>
      tpu.vector_store %arg8[%c0_49, %c0_50], %109 {strides = array<i32>} : memref<8x1xf32, #tpu.memory_space<vmem>>, vector<8x1xf32>,
      %c0_51 = arith.constant 0 : index
      %c0_52 = arith.constant 0 : index
      %111 = vector.load %arg9[%c0_51, %c0_52] : memref<8x1xf32, #tpu.memory_space<vmem>>, vector<8x1xf32>
      tpu.vector_store %arg9[%c0_51, %c0_52], %97 {strides = array<i32>} : memref<8x1xf32, #tpu.memory_space<vmem>>, vector<8x1xf32>,
      %c0_53 = arith.constant 0 : index
      %c0_54 = arith.constant 0 : index
      %112 = vector.load %arg10[%c0_53, %c0_54] : memref<8x1xf32, #tpu.memory_space<vmem>>, vector<8x1xf32>
      tpu.vector_store %arg10[%c0_53, %c0_54], %104 {strides = array<i32>} : memref<8x1xf32, #tpu.memory_space<vmem>>, vector<8x1xf32>,
      %cst_55 = arith.constant 0.000000e+00 : f32
      %113 = vector.broadcast %cst_55 : f32 to vector<8x1xf32>
      %c0_56 = arith.constant 0 : index
      %c0_57 = arith.constant 0 : index
      %114 = vector.load %arg11[%c0_56, %c0_57] : memref<8x1xf32, #tpu.memory_space<vmem>>, vector<8x1xf32>
      tpu.vector_store %arg11[%c0_56, %c0_57], %113 {strides = array<i32>} : memref<8x1xf32, #tpu.memory_space<vmem>>, vector<8x1xf32>,
    } else {
    }
    %c0 = arith.constant 0 : index
    %c0_1 = arith.constant 0 : index
    %3 = vector.load %arg7[%c0, %c0_1] : memref<8x32xf32, #tpu.memory_space<vmem>>, vector<8x32xf32>
    %c0_2 = arith.constant 0 : index
    %c0_3 = arith.constant 0 : index
    %4 = vector.load %arg8[%c0_2, %c0_3] : memref<8x1xf32, #tpu.memory_space<vmem>>, vector<8x1xf32>
    %c0_4 = arith.constant 0 : index
    %c0_5 = arith.constant 0 : index
    %5 = vector.load %arg9[%c0_4, %c0_5] : memref<8x1xf32, #tpu.memory_space<vmem>>, vector<8x1xf32>
    %c0_6 = arith.constant 0 : index
    %c0_7 = arith.constant 0 : index
    %6 = vector.load %arg10[%c0_6, %c0_7] : memref<8x1xf32, #tpu.memory_space<vmem>>, vector<8x1xf32>
    %cst = arith.constant 0.000000e+00 : f32
    %7 = vector.broadcast %cst : f32 to vector<8x1xf32>
    %c0_8 = arith.constant 0 : index
    %c0_9 = arith.constant 0 : index
    %c0_10 = arith.constant 0 : index
    %8 = vector.load %arg5[%c0_8, %c0_9, %c0_10] : memref<2x8x32xf32, #tpu.memory_space<vmem>>, vector<1x8x32xf32>
    %9 = vector.shape_cast %8 : vector<1x8x32xf32> to vector<8x32xf32>
    %10 = arith.mulf %9, %9 : vector<8x32xf32>
    %cst_11 = arith.constant dense<0.000000e+00> : vector<8xf32>
    %11 = vector.multi_reduction <add>, %10, %cst_11 [1] : vector<8x32xf32> to vector<8xf32>
    %12 = vector.shape_cast %11 : vector<8xf32> to vector<8x1xf32>
    %13 = arith.mulf %3, %9 : vector<8x32xf32>
    %cst_12 = arith.constant dense<0.000000e+00> : vector<8xf32>
    %14 = vector.multi_reduction <add>, %13, %cst_12 [1] : vector<8x32xf32> to vector<8xf32>
    %15 = vector.shape_cast %14 : vector<8xf32> to vector<8x1xf32>
    %16 = arith.mulf %15, %4 : vector<8x1xf32>
    %cst_13 = arith.constant 1.000000e-16 : f32
    %17 = vector.broadcast %cst_13 : f32 to vector<8x1xf32>
    %18 = arith.maximumf %12, %17 : vector<8x1xf32>
    %19 = math.rsqrt %18 : vector<8x1xf32>
    %20 = arith.mulf %16, %19 : vector<8x1xf32>
    %21 = arith.maximumf %20, %5 : vector<8x1xf32>
    %22 = arith.subf %20, %21 : vector<8x1xf32>
    %23 = math.exp %22 : vector<8x1xf32>
    %24 = arith.subf %5, %21 : vector<8x1xf32>
    %25 = math.exp %24 : vector<8x1xf32>
    %26 = arith.mulf %6, %25 : vector<8x1xf32>
    %27 = arith.addf %23, %26 : vector<8x1xf32>
    %28 = math.log %27 : vector<8x1xf32>
    %29 = arith.addf %21, %28 : vector<8x1xf32>
    %c2_i32 = arith.constant 2 : i32
    %30 = arith.muli %arg1, %c2_i32 : i32
    %c0_i32_14 = arith.constant 0 : i32
    %31 = arith.addi %30, %c0_i32_14 : i32
    %c2_i32_15 = arith.constant 2 : i32
    %32 = arith.cmpi slt, %31, %c2_i32_15 : i32
    %33 = arith.subf %29, %20 : vector<8x1xf32>
    %cst_16 = arith.constant 0.000000e+00 : f32
    %34 = vector.broadcast %cst_16 : f32 to vector<8x1xf32>
    %35 = arith.select %32, %33, %34 : vector<8x1xf32>
    %36 = arith.addf %7, %35 : vector<8x1xf32>
    %c1 = arith.constant 1 : index
    %c0_17 = arith.constant 0 : index
    %c0_18 = arith.constant 0 : index
    %37 = vector.load %arg5[%c1, %c0_17, %c0_18] : memref<2x8x32xf32, #tpu.memory_space<vmem>>, vector<1x8x32xf32>
    %38 = vector.shape_cast %37 : vector<1x8x32xf32> to vector<8x32xf32>
    %39 = arith.mulf %38, %38 : vector<8x32xf32>
    %cst_19 = arith.constant dense<0.000000e+00> : vector<8xf32>
    %40 = vector.multi_reduction <add>, %39, %cst_19 [1] : vector<8x32xf32> to vector<8xf32>
    %41 = vector.shape_cast %40 : vector<8xf32> to vector<8x1xf32>
    %42 = arith.mulf %3, %38 : vector<8x32xf32>
    %cst_20 = arith.constant dense<0.000000e+00> : vector<8xf32>
    %43 = vector.multi_reduction <add>, %42, %cst_20 [1] : vector<8x32xf32> to vector<8xf32>
    %44 = vector.shape_cast %43 : vector<8xf32> to vector<8x1xf32>
    %45 = arith.mulf %44, %4 : vector<8x1xf32>
    %cst_21 = arith.constant 1.000000e-16 : f32
    %46 = vector.broadcast %cst_21 : f32 to vector<8x1xf32>
    %47 = arith.maximumf %41, %46 : vector<8x1xf32>
    %48 = math.rsqrt %47 : vector<8x1xf32>
    %49 = arith.mulf %45, %48 : vector<8x1xf32>
    %50 = arith.maximumf %49, %5 : vector<8x1xf32>
    %51 = arith.subf %49, %50 : vector<8x1xf32>
    %52 = math.exp %51 : vector<8x1xf32>
    %53 = arith.subf %5, %50 : vector<8x1xf32>
    %54 = math.exp %53 : vector<8x1xf32>
    %55 = arith.mulf %6, %54 : vector<8x1xf32>
    %56 = arith.addf %52, %55 : vector<8x1xf32>
    %57 = math.log %56 : vector<8x1xf32>
    %58 = arith.addf %50, %57 : vector<8x1xf32>
    %c2_i32_22 = arith.constant 2 : i32
    %59 = arith.muli %arg1, %c2_i32_22 : i32
    %c1_i32 = arith.constant 1 : i32
    %60 = arith.addi %59, %c1_i32 : i32
    %c2_i32_23 = arith.constant 2 : i32
    %61 = arith.cmpi slt, %60, %c2_i32_23 : i32
    %62 = arith.subf %58, %49 : vector<8x1xf32>
    %cst_24 = arith.constant 0.000000e+00 : f32
    %63 = vector.broadcast %cst_24 : f32 to vector<8x1xf32>
    %64 = arith.select %61, %62, %63 : vector<8x1xf32>
    %65 = arith.addf %36, %64 : vector<8x1xf32>
    %c0_25 = arith.constant 0 : index
    %c0_26 = arith.constant 0 : index
    %66 = vector.load %arg11[%c0_25, %c0_26] : memref<8x1xf32, #tpu.memory_space<vmem>>, vector<8x1xf32>
    %67 = arith.addf %66, %65 : vector<8x1xf32>
    %c0_27 = arith.constant 0 : index
    %c0_28 = arith.constant 0 : index
    %68 = vector.load %arg11[%c0_27, %c0_28] : memref<8x1xf32, #tpu.memory_space<vmem>>, vector<8x1xf32>
    tpu.vector_store %arg11[%c0_27, %c0_28], %67 {strides = array<i32>} : memref<8x1xf32, #tpu.memory_space<vmem>>, vector<8x1xf32>,
    %c0_i32_29 = arith.constant 0 : i32
    %69 = arith.cmpi eq, %arg1, %c0_i32_29 : i32
    %70 = arith.extui %69 : i1 to i32
    %c0_i32_30 = arith.constant 0 : i32
    %71 = arith.cmpi ne, %70, %c0_i32_30 : i32
    scf.if %71 {
      %c0_31 = arith.constant 0 : index
      %c0_32 = arith.constant 0 : index
      %72 = vector.load %arg11[%c0_31, %c0_32] : memref<8x1xf32, #tpu.memory_space<vmem>>, vector<8x1xf32>
      %c0_33 = arith.constant 0 : index
      %c0_34 = arith.constant 0 : index
      %73 = vector.load %arg6[%c0_33, %c0_34] : memref<8x1xf32, #tpu.memory_space<vmem>>, vector<8x1xf32>
      tpu.vector_store %arg6[%c0_33, %c0_34], %72 {strides = array<i32>} : memref<8x1xf32, #tpu.memory_space<vmem>>, vector<8x1xf32>,
    } else {
    }
    return
  }
  func.func @transform_0(%arg0: i32, %arg1: i32) -> (i32, i32) {
    %c0_i32 = arith.constant 0 : i32
    %c0_i32_0 = arith.constant 0 : i32
    return %arg0, %c0_i32 : i32, i32
  }
  func.func @transform_1(%arg0: i32, %arg1: i32) -> (i32, i32) {
    %c0_i32 = arith.constant 0 : i32
    %c0_i32_0 = arith.constant 0 : i32
    %c0_i32_1 = arith.constant 0 : i32
    return %c0_i32, %c0_i32_0 : i32, i32
  }
  func.func @transform_2(%arg0: i32, %arg1: i32) -> (i32, i32) {
    %c0_i32 = arith.constant 0 : i32
    %c0_i32_0 = arith.constant 0 : i32
    %c0_i32_1 = arith.constant 0 : i32
    return %c0_i32, %c0_i32_0 : i32, i32
  }
  func.func @transform_3(%arg0: i32, %arg1: i32) -> (i32, i32, i32) {
    %c0_i32 = arith.constant 0 : i32
    %c0_i32_0 = arith.constant 0 : i32
    return %arg1, %arg0, %c0_i32 : i32, i32, i32
  }
  func.func @transform_4(%arg0: i32, %arg1: i32) -> (i32, i32) {
    %c0_i32 = arith.constant 0 : i32
    %c0_i32_0 = arith.constant 0 : i32
    return %arg0, %c0_i32 : i32, i32
  }
}

</mosaic_0001>

<llo_original>
// kernel: tpu_custom_call.1
$region0: #{tpu_custom_call.1}
  #allocation0 [shape = 'u32[]', space=smem, size = 0x4, offset = 0x4, fixed_abs, tag = 'smem constant byte address 0x4 - core index']
  #allocation1 [shape = 'u32[144,128]{1,0:T(1,128)}', space=vmem, size = 0x12000, scoped, tag = 'internal scratch']
  #allocation2 [shape = 'f32[8,32]{1,0:T(8,128)}', space=vmem, size = 0x1000, scoped, tag = 'scratch operand']
  #allocation3 [shape = 'f32[8,1]{1,0:T(8,128)}', space=vmem, size = 0x1000, scoped, tag = 'scratch operand']
  #allocation4 [shape = 'f32[8,1]{1,0:T(8,128)}', space=vmem, size = 0x1000, scoped, tag = 'scratch operand']
  #allocation5 [shape = 'f32[8,1]{1,0:T(8,128)}', space=vmem, size = 0x1000, scoped, tag = 'scratch operand']
  #allocation6 [shape = 'f32[8,1]{1,0:T(8,128)}', space=vmem, size = 0x1000, scoped, tag = 'scratch operand']
  %s0 = inlined_call_operand.hbm [shape: f32[8,32], index: 0, kind: input, shape index: {}]
  %s1 = inlined_call_operand.hbm [shape: f32[8,32], index: 1, kind: input, shape index: {}]
  %s2 = inlined_call_operand.vmem [shape: f32[1,8], index: 2, kind: input, shape index: {}]
  %s3 = inlined_call_operand.hbm [shape: f32[2,8,32], index: 3, kind: input, shape index: {}]
  %s4 = inlined_call_operand.vmem [shape: f32[8,1], index: 4, kind: output, shape index: {}]
  %s5 = sld [smem:[#allocation0]]
  $region46: #{tpu_custom_call.1} parent=0
    _
  %s7 = ssub.s32 1, %s5
  %s8 = scalar_select 0, %s7, %s5
  $region1: #{tpu_custom_call.1} parent=0
    #allocation7 [shape = 'u8[4096]{0}', space=vmem, size = 0x1000, scoped, tag = 'input window, operand 0, single buffered']
    #allocation8 [shape = 's32[1]{0}', space=sflag, size = 0x4, scoped, tag = 'scoped memory for tpu_custom_call.1']
    #allocation9 [shape = 'u8[4096]{0}', space=vmem, size = 0x1000, scoped, tag = 'input window, operand 1, single buffered']
    #allocation10 [shape = 's32[1]{0}', space=sflag, size = 0x4, scoped, tag = 'scoped memory for tpu_custom_call.1']
    #allocation11 [shape = 'u8[8192]{0}', space=vmem, size = 0x2000, scoped, tag = 'input window, operand 3, single buffered']
    %9 = vsyncpa [#allocation8], 0
    %10 = vsyncpa [#allocation10], 0
    // Predicated region
    $region2: #{tpu_custom_call.1} parent=1 // pred_check
      _
    $region3: #{tpu_custom_call.1} parent=1 // pred_check_branch
      %12 = sbr.rel (0) target = $region5
    $region4: #{tpu_custom_call.1} parent=1 // pred_region
      %s14 = ssub.s32 128, 128
      %15 = vsyncadd [#allocation8], %s14
      %s17 = sshll.u32 [#allocation7], 4
      %s18 = int_to_ptr.vmem [resolvable:$true] %s17
      %20 = dma.hbm_to_vmem [thread:$0]  %s0, 128, %s18, [#allocation8]
    $region5: #{tpu_custom_call.1} parent=1 // pred_fallthru
      _
    // Predicated region
    $region6: #{tpu_custom_call.1} parent=1 // pred_check
      _
    $region7: #{tpu_custom_call.1} parent=1 // pred_check_branch
      %22 = sbr.rel (0) target = $region9
    $region8: #{tpu_custom_call.1} parent=1 // pred_region
      %s24 = ssub.s32 128, 128
      %25 = vsyncadd [#allocation10], %s24
      %s27 = sshll.u32 [#allocation9], 4
      %s28 = int_to_ptr.vmem [resolvable:$true] %s27
      %30 = dma.hbm_to_vmem [thread:$0]  %s1, 128, %s28, [#allocation10]
    $region9: #{tpu_custom_call.1} parent=1 // pred_fallthru
      _
    // Predicated region
    $region10: #{tpu_custom_call.1} parent=1 // pred_check
      _
    $region11: #{tpu_custom_call.1} parent=1 // pred_check_branch
      %32 = sbr.rel (0) target = $region13
    $region12: #{tpu_custom_call.1} parent=1 // pred_region
      _
    $region13: #{tpu_custom_call.1} parent=1 // pred_fallthru
      _
    // Predicated region
    $region14: #{tpu_custom_call.1} parent=1 // pred_check
      _
    $region15: #{tpu_custom_call.1} parent=1 // pred_check_branch
      %34 = sbr.rel (0) target = $region17
    $region16: #{tpu_custom_call.1} parent=1 // pred_region
      %s36 = ssub.s32 256, 256
      %37 = vsyncadd [#allocation10], %s36
      %s38 = sshll.u32 [#allocation11], 4
      %s39 = int_to_ptr.vmem [resolvable:$true] %s38
      %44 = dma.hbm_to_vmem [thread:$0]  %s3, 256, %s39, [#allocation10], 128, 128, 8
    $region17: #{tpu_custom_call.1} parent=1 // pred_fallthru
      _
    // Predicated region
    $region18: #{tpu_custom_call.1} parent=1 // pred_check
      _
    $region19: #{tpu_custom_call.1} parent=1 // pred_check_branch
      %46 = sbr.rel (0) target = $region21
    $region20: #{tpu_custom_call.1} parent=1 // pred_region
      %47 = dma.done [#allocation8], 128
    $region21: #{tpu_custom_call.1} parent=1 // pred_fallthru
      _
    // Predicated region
    $region22: #{tpu_custom_call.1} parent=1 // pred_check
      _
    $region23: #{tpu_custom_call.1} parent=1 // pred_check_branch
      %49 = sbr.rel (0) target = $region25
    $region24: #{tpu_custom_call.1} parent=1 // pred_region
      %50 = dma.done [#allocation10], 128
    $region25: #{tpu_custom_call.1} parent=1 // pred_fallthru
      _
    // Predicated region
    $region26: #{tpu_custom_call.1} parent=1 // pred_check
      _
    $region27: #{tpu_custom_call.1} parent=1 // pred_check_branch
      %52 = sbr.rel (0) target = $region29
    $region28: #{tpu_custom_call.1} parent=1 // pred_region
      %53 = dma.done [#allocation10], 256
    $region29: #{tpu_custom_call.1} parent=1 // pred_fallthru
      _
    %p55 = scmp.eq.s32.totalorder 0, 0
    // Predicated region
    $region30: #{tpu_custom_call.1} parent=1 // pred_check
      %p56 = pneg %p55
    $region31: #{tpu_custom_call.1} parent=1 // pred_check_branch
      %58 = sbr.rel (%p56) target = $region33
    $region32: #{tpu_custom_call.1} parent=1 // pred_region
      %v59 = vld [vmem:[#allocation7] sm:$0xff]
      %vm60 = vcmask 261120
      %61 = vst.msk [vmem:[#allocation2] sm:$0xff] %vm60, %v59
      %v62 = vld [vmem:[#allocation7] sm:$0xff]
      %v63 = vpack.c.bf16 %v62, %v62
      %v64 = vld [vmem:[#allocation9] sm:$0xff]
      %v65 = vpack.c.bf16 %v64, %v64
      %v67 = vsel %vm60, %v63, 0
      %v70 = vsel %vm60, %v65, 0
      %72 = vmatprep.subr.bf16.mxu0 0
      %73 = vmatpush1.bf16.xpose.msra.mxu0 %v70
      %74 = vmatprep.subr.bf16.mxu0 0
      %75 = vmatpush1.bf16.xpose.msra.mxu0 0
      %76 = vmatprep.subr.bf16.mxu0 0
      %77 = vmatpush1.bf16.xpose.msra.mxu0 0
      %78 = vmatprep.subr.bf16.mxu0 0
      %79 = vmatpush1.bf16.xpose.msra.mxu0 0
      %80 = vmatprep.subr.bf16.mxu0 0
      %81 = vmatpush1.bf16.xpose.msra.mxu0 0
      %82 = vmatprep.subr.bf16.mxu0 0
      %83 = vmatpush1.bf16.xpose.msra.mxu0 0
      %84 = vmatprep.subr.bf16.mxu0 0
      %85 = vmatpush1.bf16.xpose.msra.mxu0 0
      %86 = vmatprep.subr.bf16.mxu0 0
      %87 = vmatpush1.bf16.xpose.msra.mxu0 0
      %88 = vmatprep.subr.bf16.mxu0 0
      %89 = vmatpush1.bf16.xpose.msra.mxu0 0
      %90 = vmatprep.subr.bf16.mxu0 0
      %91 = vmatpush1.bf16.xpose.msra.mxu0 0
      %92 = vmatprep.subr.bf16.mxu0 0
      %93 = vmatpush1.bf16.xpose.msra.mxu0 0
      %94 = vmatprep.subr.bf16.mxu0 0
      %95 = vmatpush1.bf16.xpose.msra.mxu0 0
      %96 = vmatprep.subr.bf16.mxu0 0
      %97 = vmatpush1.bf16.xpose.msra.mxu0 0
      %98 = vmatprep.subr.bf16.mxu0 0
      %99 = vmatpush1.bf16.xpose.msra.mxu0 0
      %100 = vmatprep.subr.bf16.mxu0 0
      %101 = vmatpush1.bf16.xpose.msra.mxu0 0
      %102 = vmatprep.subr.bf16.mxu0 0
      %103 = vmatpush1.bf16.xpose.msra.mxu0 0
      %104 = vmatprep.mubr.bf16.mxu0 0
      %105 = vmatmul.mubr.bf16.gmra.mrb[0].mxu0 %v67
      %v106 = vpop.f32.mrb[0].mxu0
      %v107 = vadd.f32 0.0, %v106
      %v108 = vpop.f32.mrb[0].mxu0
      %v109 = vpop.f32.mrb[0].mxu0
      %v110 = vpop.f32.mrb[0].mxu0
      %111 = vdwg.mxu0
      %v112 = vmul.f32 %v59, %v59
      %v113 = vsel %vm60, %v112, 0.0
      %114 = vadd.xlane.f32.xlu0 %v113
      %v115 = vpop.xlane.xlu0 %114
      %v116 = vrsqrt.pop %v115
      %v117 = vmul.f32 %v107, %v116
      %v118 = vld [vmem:[%s2] sm:$0x1]
      %v120 = vlaneseq
      %v121 = vshrl.u32 %v120, 7
      %v122 = vsub.s32 0, %v121
      %v123 = vrot.slane %v118, %v122
      %v125 = vmul.f32 %v117, %v123
      %s126 = smul.u32 0, 8
      %v127 = vlaneseq
      %v128 = vshrl.u32 %v127, 7
      %v129 = vstv %s126
      %v130 = vadd.s32 %v128, %v129
      %v131 = vlaneseq
      %v132 = vand.u32 %v131, 127
      %vm133 = vcmp.ne.s32.totalorder %v130, %v132
      %v134 = vsel %vm133, %v125, -inf
      %vm135 = vcmask 64512
      %v136 = vsel %vm135, %v134, -inf
      %137 = vmax.xlane.f32.xlu0 %v136
      %v138 = vpop.xlane.xlu0 %137
      %v139 = vsub.f32 %v125, %v138
      %v140 = vmul.f32 %v139, 1.442695
      %v141 = vpow.pop %v140
      %v142 = vsel %vm133, %v141, 0.0
      %v143 = vsel %vm135, %v142, 0.0
      %144 = vadd.xlane.f32.xlu0 %v143
      %v145 = vpop.xlane.xlu0 %144
      %v146 = vmax.f32 %v115, 1e-16
      %v147 = vrsqrt.pop %v146
      %v148 = vmul.f32 %v147, 2.0
      %vm149 = vcmask 7168
      %150 = vst.msk [vmem:[#allocation3] sm:$0xff] %vm149, %v148
      %151 = vst.msk [vmem:[#allocation4] sm:$0xff] %vm149, %v138
      %152 = vst.msk [vmem:[#allocation5] sm:$0xff] %vm149, %v145
      %153 = vst.msk [vmem:[#allocation6] sm:$0xff] %vm149, 0.0
    $region33: #{tpu_custom_call.1} parent=1 // pred_fallthru
      _
    %v154 = vld [vmem:[#allocation2] sm:$0xff]
    %v155 = vld [vmem:[#allocation3] sm:$0xff]
    %v156 = vld [vmem:[#allocation4] sm:$0xff]
    %v157 = vld [vmem:[#allocation5] sm:$0xff]
    %v158 = vld [vmem:[#allocation11] sm:$0xff]
    %v159 = vmul.f32 %v158, %v158
    %vm160 = vcmask 261120
    %v161 = vsel %vm160, %v159, 0.0
    %162 = vadd.xlane.f32.xlu0 %v161
    %v163 = vpop.xlane.xlu0 %162
    %v164 = vmul.f32 %v154, %v158
    %v165 = vsel %vm160, %v164, 0.0
    %166 = vadd.xlane.f32.xlu0 %v165
    %v167 = vpop.xlane.xlu0 %166
    %v168 = vmul.f32 %v167, %v155
    %v169 = vmax.f32 %v163, 1e-16
    %v170 = vrsqrt.pop %v169
    %v171 = vmul.f32 %v168, %v170
    %v172 = vmax.f32 %v171, %v156
    %v173 = vsub.f32 %v171, %v172
    %v174 = vmul.f32 %v173, 1.442695
    %v175 = vpow.pop %v174
    %v176 = vsub.f32 %v156, %v172
    %v177 = vmul.f32 %v176, 1.442695
    %v178 = vpow.pop %v177
    %v179 = vmul.f32 %v157, %v178
    %v180 = vadd.f32 %v175, %v179
    %v181 = vlog2.pop %v180
    %v182 = vmul.f32 %v181, 0.6931472
    %v183 = vadd.f32 %v172, %v182
    %s184 = smul.u32 0, 2
    %p185 = scmp.lt.s32.totalorder %s184, 2
    %v186 = vsub.f32 %v183, %v171
    %s187 = scalar_select %p185, 1, 0
    %v188 = vstv %s187
    %vm189 = vcmp.eq.s32.totalorder %v188, 1
    %v190 = vsel %vm189, %v186, 0.0
    %v191 = vadd.f32 %v190, 0.0
    %s192 = scalar_lea.vmem [#allocation11], 8
    %v193 = vld [vmem:[%s192] sm:$0xff]
    %v194 = vmul.f32 %v193, %v193
    %v195 = vsel %vm160, %v194, 0.0
    %196 = vadd.xlane.f32.xlu0 %v195
    %v197 = vpop.xlane.xlu0 %196
    %v198 = vmul.f32 %v154, %v193
    %v199 = vsel %vm160, %v198, 0.0
    %200 = vadd.xlane.f32.xlu0 %v199
    %v201 = vpop.xlane.xlu0 %200
    %v202 = vmul.f32 %v201, %v155
    %v203 = vmax.f32 %v197, 1e-16
    %v204 = vrsqrt.pop %v203
    %v205 = vmul.f32 %v202, %v204
    %v206 = vmax.f32 %v205, %v156
    %v207 = vsub.f32 %v205, %v206
    %v208 = vmul.f32 %v207, 1.442695
    %v209 = vpow.pop %v208
    %v210 = vsub.f32 %v156, %v206
    %v211 = vmul.f32 %v210, 1.442695
    %v212 = vpow.pop %v211
    %v213 = vmul.f32 %v157, %v212
    %v214 = vadd.f32 %v209, %v213
    %v215 = vlog2.pop %v214
    %v216 = vmul.f32 %v215, 0.6931472
    %v217 = vadd.f32 %v206, %v216
    %s218 = sadd.s32 %s184, 1
    %p219 = scmp.lt.s32.totalorder %s218, 2
    %v220 = vsub.f32 %v217, %v205
    %s221 = scalar_select %p219, 1, 0
    %v222 = vstv %s221
    %vm223 = vcmp.eq.s32.totalorder %v222, 1
    %v224 = vsel %vm223, %v220, 0.0
    %v225 = vadd.f32 %v191, %v224
    %v226 = vld [vmem:[#allocation6] sm:$0xff]
    %v227 = vadd.f32 %v226, %v225
    %vm228 = vcmask 7168
    %229 = vst.msk [vmem:[#allocation6] sm:$0xff] %vm228, %v227
    // Predicated region
    $region34: #{tpu_custom_call.1} parent=1 // pred_check
      %p230 = pneg %p55
    $region35: #{tpu_custom_call.1} parent=1 // pred_check_branch
      %232 = sbr.rel (%p230) target = $region37
    $region36: #{tpu_custom_call.1} parent=1 // pred_region
      %v233 = vld [vmem:[#allocation6] sm:$0xff]
      %234 = vst.msk [vmem:[%s4] sm:$0xff] %vm228, %v233
    $region37: #{tpu_custom_call.1} parent=1 // pred_fallthru
      _
    // Predicated region
    $region38: #{tpu_custom_call.1} parent=1 // pred_check
      _
    $region39: #{tpu_custom_call.1} parent=1 // pred_check_branch
      %236 = sbr.rel (0) target = $region41
    $region40: #{tpu_custom_call.1} parent=1 // pred_region
      _
    $region41: #{tpu_custom_call.1} parent=1 // pred_fallthru
      _
    // Predicated region
    $region42: #{tpu_custom_call.1} parent=1 // pred_check
      _
    $region43: #{tpu_custom_call.1} parent=1 // pred_check_branch
      %238 = sbr.rel (0) target = $region45
    $region44: #{tpu_custom_call.1} parent=1 // pred_region
      _
    $region45: #{tpu_custom_call.1} parent=1 // pred_fallthru
      _
    %239 = vsyncpa [#allocation8], 1
    %240 = vsyncpa [#allocation10], 1

</llo_original>
